<compile_context>
chip_gen: v7x
topology: tpu7x:2x2x1
jax: 0.10.0
libtpu: 0.0.40
codegen_flags: <defaults>
</compile_context>

<pallas_src>
import math

import jax
import jax.numpy as jnp
from jax.experimental import pallas as pl
from jax.experimental.pallas import tpu as pltpu

LANES = 128


def _round_up(x, m):
    return (x + m - 1) // m * m


def _make_kernel(g, has_weight):
    """Inputs: pred, tgt, ci, [E]; outputs: nsum, [cnt]."""

    def kernel(*refs):
        if g > 1:
            pred_ref, tgt_ref, ci_ref, e_ref = refs[:4]
            out_refs = refs[4:]
        else:
            pred_ref, tgt_ref, ci_ref = refs[:3]
            out_refs = refs[3:]
        if has_weight:
            nsum_ref, cnt_ref = out_refs
        else:
            (nsum_ref,) = out_refs

        @pl.when(pl.program_id(1) == 0)
        def _init():
            nsum_ref[...] = jnp.zeros(nsum_ref.shape, nsum_ref.dtype)
            if has_weight:
                cnt_ref[...] = jnp.zeros(cnt_ref.shape, cnt_ref.dtype)

        pred = pred_ref[...]                              # (tm, gC) native dtype
        if g > 1:
            # MXU expansion: texp[r, l] == target of sub-row l // C.
            # Exact: targets < 128 are exact in bf16; f32 accumulate of a
            # single nonzero product per output element.
            texp = jnp.dot(tgt_ref[...], e_ref[...],
                           preferred_element_type=jnp.float32)   # (tm, gC)
        else:
            texp = tgt_ref[...]                           # (tm, 1) f32, broadcasts

        hit = texp == ci_ref[...]                         # (tm, gC) bool
        # native-dtype select; f32 only on the values that feed the accumulator
        sel = jnp.where(hit, pred, 0).astype(jnp.float32)
        nsum_ref[...] += jnp.sum(sel, axis=0, keepdims=True).reshape(nsum_ref.shape)
        if has_weight:
            cnt_ref[...] += jnp.sum(hit.astype(jnp.float32), axis=0,
                                    keepdims=True).reshape(cnt_ref.shape)

    return kernel


def unmasked_weighted_nll_loss(pred, target, weight=None, *, tm=None, split=1,
                               pred_buffer_bytes=8 * 1024 * 1024):
    """pred: (N, C) log-probs (any float dtype), target: (N,) int, weight: (C,) or None."""
    pred = jnp.asarray(pred)
    target = jnp.asarray(target)
    n, c = pred.shape
    itemsize = jnp.dtype(pred.dtype).itemsize
    has_weight = weight is not None

    # ---- lane-dense packing factor: (N, C) -> (N/g, g*C) --------------------
    if c >= LANES:
        g = 1
    else:
        g = LANES // c                                   # g*C <= 128
        g_exact = LANES // math.gcd(c, LANES)            # smallest g with g*C % 128 == 0
        if g_exact * c <= 512:
            g = g_exact
    gc = g * c
    # g > 1 implies C < 128, so targets are exact in bf16 (and in f32 otherwise).
    tgt_dtype = jnp.bfloat16 if g > 1 else jnp.float32

    # sublane multiple for the row tile (pred native tiling; bf16 targets need 16)
    sub = 8 * max(1, 4 // itemsize)
    if g > 1:
        sub = max(sub, 16)

    rp = -(-n // g)                                      # packed rows (pre-padding)
    row_bytes = gc * itemsize
    if tm is None:
        by_budget = max(sub, (pred_buffer_bytes // max(row_bytes, 1)) // sub * sub)
        needed = _round_up(max(1, -(-rp // split)), sub)
        tm = max(sub, min(by_budget, needed, 16384))
    else:
        tm = _round_up(max(int(tm), sub), sub)           # validate user tm

    rp_pad = _round_up(rp, split * tm)
    inner = rp_pad // (split * tm)
    n_pad = rp_pad * g

    pred_p = jnp.pad(pred, ((0, n_pad - n), (0, 0))) if n_pad != n else pred
    pred_packed = pred_p.reshape(rp_pad, gc)             # row-major view reshape

    # -1 sentinel on padded rows => never hits => contributes 0 to sums & counts
    tgt = jnp.pad(target.astype(jnp.float32), (0, n_pad - n), constant_values=-1.0)
    tgt_packed = tgt.reshape(rp_pad, g).astype(tgt_dtype)

    # per-lane class id (VMEM resident); f32 compare exact for C < 2**24
    ci = (jnp.arange(gc, dtype=jnp.int32) % c).astype(jnp.float32).reshape(1, gc)

    def row_map(p, i):
        return (p * inner + i, 0)

    in_specs = [
        pl.BlockSpec((tm, gc), row_map),                 # pred (streamed, native dtype)
        pl.BlockSpec((tm, g), row_map),                  # targets (streamed)
        pl.BlockSpec((1, gc), lambda p, i: (0, 0)),      # class ids (resident)
    ]
    args = [pred_packed, tgt_packed, ci]
    if g > 1:
        e = (jnp.arange(gc, dtype=jnp.int32) // c
             == jnp.arange(g, dtype=jnp.int32)[:, None]).astype(jnp.bfloat16)
        in_specs.append(pl.BlockSpec((g, gc), lambda p, i: (0, 0)))   # E (resident)
        args.append(e)

    out_spec = pl.BlockSpec((1, 1, gc), lambda p, i: (p, 0, 0))
    out_shape_one = jax.ShapeDtypeStruct((split, 1, gc), jnp.float32)
    if has_weight:
        out_shape = (out_shape_one, out_shape_one)
        out_specs = (out_spec, out_spec)
    else:
        out_shape = out_shape_one
        out_specs = out_spec

    tgt_isize = jnp.dtype(tgt_dtype).itemsize
    vmem_need = (2 * tm * gc * itemsize                  # pred double buffer
                 + 2 * tm * g * tgt_isize                # target double buffer
                 + gc * 4                                # ci
                 + (g * gc * 2 if g > 1 else 0)          # E
                 + 4 * (2 if has_weight else 1) * gc * 4)  # resident out blocks
    vmem_limit = int(min(48 * 1024 * 1024, max(32 * 1024 * 1024, 2 * vmem_need)))

    flops = int(4 * rp_pad * gc + (2 * rp_pad * g * gc if g > 1 else 0))
    bytes_accessed = int(rp_pad * gc * itemsize + rp_pad * g * tgt_isize
                         + (2 if has_weight else 1) * split * gc * 4)

    result = pl.pallas_call(
        _make_kernel(g, has_weight),
        grid=(split, inner),
        in_specs=in_specs,
        out_specs=out_specs,
        out_shape=out_shape,
        compiler_params=pltpu.CompilerParams(
            dimension_semantics=("parallel", "arbitrary"),
            vmem_limit_bytes=vmem_limit,
        ),
        cost_estimate=pl.CostEstimate(
            flops=flops, transcendentals=0, bytes_accessed=bytes_accessed),
    )(*args)

    if has_weight:
        nsum, cnt = result
        w_t = jnp.tile(jnp.asarray(weight, jnp.float32), g)   # w_t[l] = w[l % C]
        nsum_cols = jnp.sum(nsum, axis=(0, 1))                # (gC,)
        cnt_cols = jnp.sum(cnt, axis=(0, 1))
        return -jnp.dot(nsum_cols, w_t) / jnp.dot(cnt_cols, w_t)
    return -jnp.sum(result)


def _reference(pred, target, weight=None):
    # pure-JAX reference mirroring the PyTorch module
    n = pred.shape[0]
    picked = pred.astype(jnp.float32)[jnp.arange(n), target]
    if weight is None:
        return -jnp.sum(picked)
    wt = jnp.asarray(weight, jnp.float32)[target]
    return -jnp.sum(wt * picked) / jnp.sum(wt)


if __name__ == "__main__":
    key = jax.random.PRNGKey(0)
    batch, seq_len, n_classes = 2, 8, 4
    n = batch * seq_len

    k1, k2, k3, k4, k5, k6 = jax.random.split(key, 6)
    logits = jax.random.normal(k1, (n, n_classes), jnp.float32)
    pred = jax.nn.log_softmax(logits, axis=-1)            # NLLLoss expects log-probs
    target = jax.random.randint(k2, (n,), 0, n_classes, jnp.int32)
    weight = jnp.array([1.0, 2.0, 0.5, 1.5], jnp.float32)

    # 1) weight=None -> plain NLLLoss(reduction='sum'); lane-packed path (C=4 -> g=32)
    loss = jax.block_until_ready(unmasked_weighted_nll_loss(pred, target))
    ref = _reference(pred, target)
    assert jnp.allclose(loss, ref, atol=1e-5, rtol=1e-5), (loss, ref)

    # 2) per-class weight, normalized by sum(weight[target])
    loss_w = jax.block_until_ready(unmasked_weighted_nll_loss(pred, target, weight))
    ref_w = _reference(pred, target, weight)
    assert jnp.allclose(loss_w, ref_w, atol=1e-5, rtol=1e-5), (loss_w, ref_w)

    # 3) bf16 pred streamed natively, small tm -> multi-step grid accumulation
    n2, c2 = 1000, 8
    logits2 = jax.random.normal(k3, (n2, c2), jnp.float32)
    pred2 = jax.nn.log_softmax(logits2, axis=-1).astype(jnp.bfloat16)
    target2 = jax.random.randint(k4, (n2,), 0, c2, jnp.int32)
    weight2 = jnp.linspace(0.5, 2.0, c2, dtype=jnp.float32)
    loss2 = jax.block_until_ready(
        unmasked_weighted_nll_loss(pred2, target2, weight2, tm=8))
    ref2 = _reference(pred2, target2, weight2)
    assert jnp.allclose(loss2, ref2, atol=1e-3, rtol=1e-4), (loss2, ref2)

    # 4) C >= 128 -> unpacked (g == 1) path, multi-step row grid
    n3, c3 = 300, 160
    logits3 = jax.random.normal(k5, (n3, c3), jnp.float32)
    pred3 = jax.nn.log_softmax(logits3, axis=-1)
    target3 = jax.random.randint(k6, (n3,), 0, c3, jnp.int32)
    weight3 = jnp.linspace(0.25, 1.75, c3, dtype=jnp.float32)
    loss3 = jax.block_until_ready(
        unmasked_weighted_nll_loss(pred3, target3, weight3, tm=64))
    ref3 = _reference(pred3, target3, weight3)
    assert jnp.allclose(loss3, ref3, atol=1e-3, rtol=1e-4), (loss3, ref3)

    print("KERNEL_OK")
</pallas_src>

<mosaic_0001>
module attributes {stable_mosaic.version = 11 : i64} {
  func.func @kernel(%arg0: i32, %arg1: i32, %arg2: memref<16x128xf32, #tpu.memory_space<vmem>>, %arg3: memref<16x32xbf16, #tpu.memory_space<vmem>>, %arg4: memref<1x128xf32, #tpu.memory_space<vmem>>, %arg5: memref<32x128xbf16, #tpu.memory_space<vmem>>, %arg6: memref<1x1x128xf32, #tpu.memory_space<vmem>>) attributes {dimension_semantics = [#tpu.dimension_semantics<parallel>, #tpu.dimension_semantics<arbitrary>], iteration_bounds = array<i64: 1, 1>, scalar_prefetch = 0 : i64, scratch_operands = 0 : i64, tpu.core_type = #tpu.core_type<tc>, window_params = [{transform_indices = @transform_0, window_bounds = array<i64: 16, 128>}, {transform_indices = @transform_1, window_bounds = array<i64: 16, 32>}, {pipeline_mode = #tpu.pipeline_mode<synchronous>, transform_indices = @transform_2, window_bounds = array<i64: 1, 128>}, {pipeline_mode = #tpu.pipeline_mode<synchronous>, transform_indices = @transform_3, window_bounds = array<i64: 32, 128>}, {transform_indices = @transform_4, window_bounds = array<i64: 1, 1, 128>}]} {
    %c0_i32 = arith.constant 0 : i32
    %0 = arith.cmpi eq, %arg1, %c0_i32 : i32
    %1 = arith.extui %0 : i1 to i32
    %c0_i32_0 = arith.constant 0 : i32
    %2 = arith.cmpi ne, %1, %c0_i32_0 : i32
    scf.if %2 {
      %cst_16 = arith.constant 0.000000e+00 : f32
      %19 = vector.broadcast %cst_16 : f32 to vector<1x1x128xf32>
      %c0_17 = arith.constant 0 : index
      %c0_18 = arith.constant 0 : index
      %c0_19 = arith.constant 0 : index
      %20 = vector.load %arg6[%c0_17, %c0_18, %c0_19] : memref<1x1x128xf32, #tpu.memory_space<vmem>>, vector<1x1x128xf32>
      tpu.vector_store %arg6[%c0_17, %c0_18, %c0_19], %19 {strides = array<i32>} : memref<1x1x128xf32, #tpu.memory_space<vmem>>, vector<1x1x128xf32>,
    } else {
    }
    %c0 = arith.constant 0 : index
    %c0_1 = arith.constant 0 : index
    %3 = vector.load %arg2[%c0, %c0_1] : memref<16x128xf32, #tpu.memory_space<vmem>>, vector<16x128xf32>
    %c0_2 = arith.constant 0 : index
    %c0_3 = arith.constant 0 : index
    %4 = vector.load %arg3[%c0_2, %c0_3] : memref<16x32xbf16, #tpu.memory_space<vmem>>, vector<16x32xbf16>
    %c0_4 = arith.constant 0 : index
    %c0_5 = arith.constant 0 : index
    %5 = vector.load %arg5[%c0_4, %c0_5] : memref<32x128xbf16, #tpu.memory_space<vmem>>, vector<32x128xbf16>
    %cst = arith.constant dense<0.000000e+00> : vector<16x128xf32>
    %6 = tpu.matmul %4, %5, %cst {dimension_numbers = #tpu.dot_dimension_numbers<[1], [0], [0], [1], [0, 0, 1, 1], [], []>} : vector<16x32xbf16>, vector<32x128xbf16>, vector<16x128xf32> -> vector<16x128xf32>
    %c0_6 = arith.constant 0 : index
    %c0_7 = arith.constant 0 : index
    %7 = vector.load %arg4[%c0_6, %c0_7] : memref<1x128xf32, #tpu.memory_space<vmem>>, vector<1x128xf32>
    %8 = vector.broadcast %7 : vector<1x128xf32> to vector<16x128xf32>
    %9 = arith.cmpf oeq, %6, %8 : vector<16x128xf32>
    %c0_i32_8 = arith.constant 0 : i32
    %10 = arith.sitofp %c0_i32_8 : i32 to f32
    %11 = vector.broadcast %10 : f32 to vector<16x128xf32>
    %12 = arith.select %9, %3, %11 : vector<16x128xi1>, vector<16x128xf32>
    %c0_9 = arith.constant 0 : index
    %c0_10 = arith.constant 0 : index
    %c0_11 = arith.constant 0 : index
    %13 = vector.load %arg6[%c0_9, %c0_10, %c0_11] : memref<1x1x128xf32, #tpu.memory_space<vmem>>, vector<1x1x128xf32>
    %cst_12 = arith.constant dense<0.000000e+00> : vector<128xf32>
    %14 = vector.multi_reduction <add>, %12, %cst_12 [0] : vector<16x128xf32> to vector<128xf32>
    %15 = vector.shape_cast %14 : vector<128xf32> to vector<1x128xf32>
    %16 = vector.shape_cast %15 : vector<1x128xf32> to vector<1x1x128xf32>
    %17 = arith.addf %13, %16 : vector<1x1x128xf32>
    %c0_13 = arith.constant 0 : index
    %c0_14 = arith.constant 0 : index
    %c0_15 = arith.constant 0 : index
    %18 = vector.load %arg6[%c0_13, %c0_14, %c0_15] : memref<1x1x128xf32, #tpu.memory_space<vmem>>, vector<1x1x128xf32>
    tpu.vector_store %arg6[%c0_13, %c0_14, %c0_15], %17 {strides = array<i32>} : memref<1x1x128xf32, #tpu.memory_space<vmem>>, vector<1x1x128xf32>,
    return
  }
  func.func @transform_0(%arg0: i32, %arg1: i32) -> (i32, i32) {
    %c1_i32 = arith.constant 1 : i32
    %0 = arith.muli %arg0, %c1_i32 : i32
    %1 = arith.addi %0, %arg1 : i32
    %c0_i32 = arith.constant 0 : i32
    %c0_i32_0 = arith.constant 0 : i32
    return %1, %c0_i32 : i32, i32
  }
  func.func @transform_1(%arg0: i32, %arg1: i32) -> (i32, i32) {
    %c1_i32 = arith.constant 1 : i32
    %0 = arith.muli %arg0, %c1_i32 : i32
    %1 = arith.addi %0, %arg1 : i32
    %c0_i32 = arith.constant 0 : i32
    %c0_i32_0 = arith.constant 0 : i32
    return %1, %c0_i32 : i32, i32
  }
  func.func @transform_2(%arg0: i32, %arg1: i32) -> (i32, i32) {
    %c0_i32 = arith.constant 0 : i32
    %c0_i32_0 = arith.constant 0 : i32
    %c0_i32_1 = arith.constant 0 : i32
    return %c0_i32, %c0_i32_0 : i32, i32
  }
  func.func @transform_3(%arg0: i32, %arg1: i32) -> (i32, i32) {
    %c0_i32 = arith.constant 0 : i32
    %c0_i32_0 = arith.constant 0 : i32
    %c0_i32_1 = arith.constant 0 : i32
    return %c0_i32, %c0_i32_0 : i32, i32
  }
  func.func @transform_4(%arg0: i32, %arg1: i32) -> (i32, i32, i32) {
    %c0_i32 = arith.constant 0 : i32
    %c0_i32_0 = arith.constant 0 : i32
    %c0_i32_1 = arith.constant 0 : i32
    return %arg0, %c0_i32, %c0_i32_0 : i32, i32, i32
  }
}

</mosaic_0001>

<llo_original>
// kernel: tpu_custom_call.1
$region0: #{tpu_custom_call.1}
  #allocation0 [shape = 'u32[]', space=smem, size = 0x4, offset = 0x4, fixed_abs, tag = 'smem constant byte address 0x4 - core index']
  #allocation1 [shape = 'u32[144,128]{1,0:T(1,128)}', space=vmem, size = 0x12000, scoped, tag = 'internal scratch']
  %s0 = inlined_call_operand.hbm [shape: f32[16,128], index: 0, kind: input, shape index: {}]
  %s1 = inlined_call_operand.hbm [shape: bf16[16,32], index: 1, kind: input, shape index: {}]
  %s2 = inlined_call_operand.vmem [shape: f32[1,128], index: 2, kind: input, shape index: {}]
  %s3 = inlined_call_operand.hbm [shape: bf16[32,128], index: 3, kind: input, shape index: {}]
  %s4 = inlined_call_operand.hbm [shape: f32[1,1,128], index: 4, kind: output, shape index: {}]
  %s5 = sld [smem:[#allocation0]]
  $region42: #{tpu_custom_call.1} parent=0
    _
  %s7 = ssub.s32 1, %s5
  %s8 = scalar_select 0, %s7, %s5
  $region1: #{tpu_custom_call.1} parent=0
    #allocation2 [shape = 'u8[8192]{0}', space=vmem, size = 0x2000, scoped, tag = 'input window, operand 0, single buffered']
    #allocation3 [shape = 's32[1]{0}', space=sflag, size = 0x4, scoped, tag = 'scoped memory for tpu_custom_call.1']
    #allocation4 [shape = 's32[1]{0}', space=sflag, size = 0x4, scoped, tag = 'scoped memory for tpu_custom_call.1']
    #allocation5 [shape = 'u8[4096]{0}', space=vmem, size = 0x1000, scoped, tag = 'input window, operand 1, single buffered']
    #allocation6 [shape = 's32[1]{0}', space=sflag, size = 0x4, scoped, tag = 'scoped memory for tpu_custom_call.1']
    #allocation7 [shape = 'u8[8192]{0}', space=vmem, size = 0x2000, scoped, tag = 'input window, operand 3, single buffered']
    #allocation8 [shape = 'u8[512]{0}', space=vmem, size = 0x400, scoped, tag = 'output window, operand 0, single buffered']
    %9 = vsyncpa [#allocation3], 0
    %10 = vsyncpa [#allocation6], 0
    %11 = vsyncpa [#allocation4], 0
    // Predicated region
    $region2: #{tpu_custom_call.1} parent=1 // pred_check
      _
    $region3: #{tpu_custom_call.1} parent=1 // pred_check_branch
      %13 = sbr.rel (0) target = $region5
    $region4: #{tpu_custom_call.1} parent=1 // pred_region
      %s14 = sadd.s32 0, 0
      %s15 = smul.u32 2, %s14
      %s17 = ssub.s32 256, 256
      %18 = vsyncadd [#allocation3], %s17
      %s19 = smul.addr %s15, 128
      %s20 = scalar_lea.hbm %s0, %s19
      %s21 = sshll.u32 [#allocation2], 4
      %s22 = int_to_ptr.vmem [resolvable:$true] %s21
      %27 = dma.hbm_to_vmem [thread:$0]  %s20, 256, %s22, [#allocation3], 128, 128, 8
    $region5: #{tpu_custom_call.1} parent=1 // pred_fallthru
      _
    // Predicated region
    $region6: #{tpu_custom_call.1} parent=1 // pred_check
      _
    $region7: #{tpu_custom_call.1} parent=1 // pred_check_branch
      %29 = sbr.rel (0) target = $region9
    $region8: #{tpu_custom_call.1} parent=1 // pred_region
      %s30 = sadd.s32 0, 0
      %s31 = smul.u32 2, %s30
      %s33 = ssub.s32 128, 128
      %34 = vsyncadd [#allocation6], %s33
      %s35 = smul.addr %s31, 64
      %s36 = scalar_lea.hbm %s1, %s35
      %s37 = sshll.u32 [#allocation5], 4
      %s38 = int_to_ptr.vmem [resolvable:$true] %s37
      %43 = dma.hbm_to_vmem [thread:$0]  %s36, 128, %s38, [#allocation6], 64, 64, 4
    $region9: #{tpu_custom_call.1} parent=1 // pred_fallthru
      _
    // Predicated region
    $region10: #{tpu_custom_call.1} parent=1 // pred_check
      _
    $region11: #{tpu_custom_call.1} parent=1 // pred_check_branch
      %45 = sbr.rel (0) target = $region13
    $region12: #{tpu_custom_call.1} parent=1 // pred_region
      _
    $region13: #{tpu_custom_call.1} parent=1 // pred_fallthru
      _
    // Predicated region
    $region14: #{tpu_custom_call.1} parent=1 // pred_check
      _
    $region15: #{tpu_custom_call.1} parent=1 // pred_check_branch
      %47 = sbr.rel (0) target = $region17
    $region16: #{tpu_custom_call.1} parent=1 // pred_region
      %s49 = ssub.s32 256, 256
      %50 = vsyncadd [#allocation6], %s49
      %s51 = sshll.u32 [#allocation7], 4
      %s52 = int_to_ptr.vmem [resolvable:$true] %s51
      %57 = dma.hbm_to_vmem [thread:$0]  %s3, 256, %s52, [#allocation6], 64, 64, 4
    $region17: #{tpu_custom_call.1} parent=1 // pred_fallthru
      _
    // Predicated region
    $region18: #{tpu_custom_call.1} parent=1 // pred_check
      _
    $region19: #{tpu_custom_call.1} parent=1 // pred_check_branch
      %59 = sbr.rel (0) target = $region21
    $region20: #{tpu_custom_call.1} parent=1 // pred_region
      %60 = dma.done [#allocation3], 256
    $region21: #{tpu_custom_call.1} parent=1 // pred_fallthru
      _
    // Predicated region
    $region22: #{tpu_custom_call.1} parent=1 // pred_check
      _
    $region23: #{tpu_custom_call.1} parent=1 // pred_check_branch
      %62 = sbr.rel (0) target = $region25
    $region24: #{tpu_custom_call.1} parent=1 // pred_region
      %63 = dma.done [#allocation6], 128
    $region25: #{tpu_custom_call.1} parent=1 // pred_fallthru
      _
    // Predicated region
    $region26: #{tpu_custom_call.1} parent=1 // pred_check
      _
    $region27: #{tpu_custom_call.1} parent=1 // pred_check_branch
      %65 = sbr.rel (0) target = $region29
    $region28: #{tpu_custom_call.1} parent=1 // pred_region
      %66 = dma.done [#allocation6], 256
    $region29: #{tpu_custom_call.1} parent=1 // pred_fallthru
      _
    %s67 = sadd.s32 0, 0
    %s68 = smul.u32 2, %s67
    %s69 = sadd.s32 0, 0
    %s70 = smul.u32 2, %s69
    %p72 = scmp.eq.s32.totalorder 0, 0
    // Predicated region
    $region30: #{tpu_custom_call.1} parent=1 // pred_check
      %p73 = pneg %p72
    $region31: #{tpu_custom_call.1} parent=1 // pred_check_branch
      %75 = sbr.rel (%p73) target = $region33
    $region32: #{tpu_custom_call.1} parent=1 // pred_region
      %76 = vst [vmem:[#allocation8] sm:$0x1] 0.0
    $region33: #{tpu_custom_call.1} parent=1 // pred_fallthru
      _
    %v77 = vld [vmem:[#allocation2] sm:$0xff]
    %v78 = vld [vmem:[#allocation2 + $0x8] sm:$0xff]
    %v79 = vld [vmem:[#allocation5] sm:$0xf]
    %v80 = vld [vmem:[#allocation5 + $0x4] sm:$0xf]
    %v81 = vld [vmem:[#allocation7] sm:$0xf]
    %v82 = vld [vmem:[#allocation7 + $0x4] sm:$0xf]
    %v83 = vld [vmem:[#allocation7 + $0x8] sm:$0xf]
    %v84 = vld [vmem:[#allocation7 + $0xc] sm:$0xf]
    %v87 = vunpack.c.l.b16 %v79
    %v88 = vunpack.c.l.b16 %v80
    %v89 = vpack.c.b16 %v88, %v87
    %v94 = vunpack.c.l.b16 %v81
    %v95 = vunpack.c.l.b16 %v82
    %v96 = vunpack.c.l.b16 %v83
    %v97 = vunpack.c.l.b16 %v84
    %v98 = vpack.c.b16 %v95, %v94
    %v99 = vpack.c.b16 %v97, %v96
    %vm102 = vcmask 261120
    %v104 = vsel %vm102, %v89, 0
    %106 = vmatprep.subr.bf16.mxu0 0
    %107 = vmatpush1.bf16.msra.mxu0 %v98
    %108 = vmatprep.subr.bf16.mxu0 0
    %109 = vmatpush1.bf16.msra.mxu0 %v99
    %110 = vmatprep.subr.bf16.mxu0 0
    %111 = vmatpush1.bf16.msra.mxu0 0
    %112 = vmatprep.subr.bf16.mxu0 0
    %113 = vmatpush1.bf16.msra.mxu0 0
    %114 = vmatprep.subr.bf16.mxu0 0
    %115 = vmatpush1.bf16.msra.mxu0 0
    %116 = vmatprep.subr.bf16.mxu0 0
    %117 = vmatpush1.bf16.msra.mxu0 0
    %118 = vmatprep.subr.bf16.mxu0 0
    %119 = vmatpush1.bf16.msra.mxu0 0
    %120 = vmatprep.subr.bf16.mxu0 0
    %121 = vmatpush1.bf16.msra.mxu0 0
    %122 = vmatprep.subr.bf16.mxu0 0
    %123 = vmatpush1.bf16.msra.mxu0 0
    %124 = vmatprep.subr.bf16.mxu0 0
    %125 = vmatpush1.bf16.msra.mxu0 0
    %126 = vmatprep.subr.bf16.mxu0 0
    %127 = vmatpush1.bf16.msra.mxu0 0
    %128 = vmatprep.subr.bf16.mxu0 0
    %129 = vmatpush1.bf16.msra.mxu0 0
    %130 = vmatprep.subr.bf16.mxu0 0
    %131 = vmatpush1.bf16.msra.mxu0 0
    %132 = vmatprep.subr.bf16.mxu0 0
    %133 = vmatpush1.bf16.msra.mxu0 0
    %134 = vmatprep.subr.bf16.mxu0 0
    %135 = vmatpush1.bf16.msra.mxu0 0
    %136 = vmatprep.subr.bf16.mxu0 0
    %137 = vmatpush1.bf16.msra.mxu0 0
    %138 = vmatprep.mubr.bf16.mxu0 0
    %139 = vmatmul.mubr.bf16.gmra.mrb[0].mxu0 %v104
    %v140 = vpop.f32.mrb[0].mxu0
    %v141 = vadd.f32 0.0, %v140
    %v142 = vpop.f32.mrb[0].mxu0
    %v143 = vpop.f32.mrb[0].mxu0
    %v144 = vadd.f32 0.0, %v143
    %v145 = vpop.f32.mrb[0].mxu0
    %146 = vdwg.mxu0
    %v147 = vld [vmem:[%s2] sm:$0x1]
    %v149 = vlaneseq
    %v150 = vshrl.u32 %v149, 7
    %v151 = vsub.s32 0, %v150
    %v152 = vrot.slane %v147, %v151
    %vm154 = vcmp.eq.f32.partialorder %v141, %v152
    %vm155 = vcmp.eq.f32.partialorder %v144, %v152
    %v156 = vsel %vm154, %v77, 0.0
    %v157 = vsel %vm155, %v78, 0.0
    %v158 = vld [vmem:[#allocation8] sm:$0x1]
    %v159 = vadd.f32 %v156, %v157
    %v160 = vrot.slane %v159, 4
    %v161 = vadd.f32 %v159, %v160
    %v162 = vrot.slane %v161, 2
    %v163 = vadd.f32 %v161, %v162
    %v164 = vrot.slane %v163, 1
    %v165 = vadd.f32 %v163, %v164
    %v166 = vadd.f32 %v158, %v165
    %167 = vst [vmem:[#allocation8] sm:$0x1] %v166
    // Predicated region
    $region34: #{tpu_custom_call.1} parent=1 // pred_check
      _
    $region35: #{tpu_custom_call.1} parent=1 // pred_check_branch
      %169 = sbr.rel (0) target = $region37
    $region36: #{tpu_custom_call.1} parent=1 // pred_region
      %s171 = ssub.s32 16, 16
      %172 = vsyncadd [#allocation4], %s171
      %s174 = sshll.u32 [#allocation8], 4
      %s175 = int_to_ptr.vmem [resolvable:$true] %s174
      %177 = dma.vmem_to_hbm [thread:$0]  %s175, 16, %s4, [#allocation4]
    $region37: #{tpu_custom_call.1} parent=1 // pred_fallthru
      _
    // Predicated region
    $region38: #{tpu_custom_call.1} parent=1 // pred_check
      _
    $region39: #{tpu_custom_call.1} parent=1 // pred_check_branch
      %179 = sbr.rel (0) target = $region41
    $region40: #{tpu_custom_call.1} parent=1 // pred_region
      %180 = dma.done [#allocation4], 16
    $region41: #{tpu_custom_call.1} parent=1 // pred_fallthru
      _
    %181 = vsyncpa [#allocation3], 1
    %182 = vsyncpa [#allocation6], 1
    %183 = vsyncpa [#allocation4], 1

</llo_original>
